<compile_context>
chip_gen: v5e
topology: v5e:2x2
jax: 0.10.0
libtpu: 0.0.40
codegen_flags: <defaults>
</compile_context>

<pallas_src>
import functools

import numpy as np
import jax
import jax.numpy as jnp
from jax.experimental import pallas as pl
from jax.experimental.pallas import tpu as pltpu

# ----- Lab_Loss default hyperparameters -----
ALPHA = 1.0
WEIGHT = 1.0
LEVELS = 7
VMIN = -80.0
VMAX = 80.0

LOG_LO = float(np.log(0.001))
LOG_HI = float(np.log(0.999))
NEG_BIG = -1e30          # pad-row logit; exp(NEG_BIG - m) underflows to exactly 0 in f32

MAX_TILE = 8192          # keeps the (112, tile) f32 intermediates comfortable in v7x's 64 MiB VMEM
VMEM_LIMIT = 48 * 1024 * 1024


def _round_up(x, m):
    return (x + m - 1) // m * m


def _cdiv(a, b):
    return (a + b - 1) // b


# ----------------------------- constant tables (passed as kernel inputs) -----------------------------
def _quant_ab_centers(bins=LEVELS):
    # Lab_Loss.forward calls quantAB(levels, self.vmin, self.vmax) against the
    # signature quantAB(bins, vmax, vmin) -> bounds are swapped; reproduced
    # exactly (only a permutation of the 49 bin centers; loss is unchanged).
    inner_vmin, inner_vmax = VMAX, VMIN
    start = inner_vmin + (inner_vmax - inner_vmin) / (2 * bins)
    stop = inner_vmax - (inner_vmax - inner_vmin) / (2 * bins)
    a = np.linspace(start, stop, bins)
    ta = np.repeat(a, bins)   # cartesian_prod, first coordinate
    tb = np.tile(a, bins)     # cartesian_prod, second coordinate
    return ta, tb


def _build_color_matrices():
    # TODO(synk): rgb2lab was not supplied with the module; this is the standard
    # sRGB([0,1]) -> CIELAB (D65) conversion used by such repos.
    m3 = np.array([[0.412453, 0.357580, 0.180423],
                   [0.212671, 0.715160, 0.072169],
                   [0.019334, 0.119193, 0.950227]])
    m3 = m3 / np.array([0.95047, 1.0, 1.08883])[:, None]   # fold white point in
    m_xyz = np.zeros((6, 6), np.float32)
    m_xyz[:3, :3] = m3
    m_xyz[3:, 3:] = m3

    l3 = np.array([[0.0, 116.0, 0.0],
                   [500.0, -500.0, 0.0],
                   [0.0, 200.0, -200.0]])
    # Row 6 stays all-zero: together with bias row 6 = 1.0 it yields a constant
    # ones row that feeds the bias column of the fused logits matmul.
    m_lab7 = np.zeros((7, 6), np.float32)
    m_lab7[:3, :3] = l3
    m_lab7[3:6, 3:] = l3
    bias7 = np.array([-16.0, 0.0, 0.0, -16.0, 0.0, 0.0, 1.0], np.float32)[:, None]
    return m_xyz, m_lab7, bias7


def _build_logits_weights(bins=LEVELS, alpha=ALPHA):
    # softmax(-a*((A-ta)^2+(B-tb)^2)) == softmax(2a(ta*A+tb*B) - a(ta^2+tb^2))
    # (pixel-constant -a*(A^2+B^2) dropped).  Bias folded via the ones row of lab.
    ta, tb = _quant_ab_centers(bins)
    b2 = bins * bins                     # 49
    half = _round_up(b2, 8)              # 56: 8-aligned so s[half:] slices for free
    w = np.zeros((2 * half, 7), np.float32)
    natsq = (-alpha) * (ta * ta + tb * tb)
    # img logits: columns [A_i, B_i, const]
    w[0:b2, 1] = 2.0 * alpha * ta
    w[0:b2, 2] = 2.0 * alpha * tb
    w[0:b2, 6] = natsq
    w[b2:half, 6] = NEG_BIG              # pad rows -> logits == -1e30
    # gt logits: columns [A_g, B_g, const]
    w[half:half + b2, 4] = 2.0 * alpha * ta
    w[half:half + b2, 5] = 2.0 * alpha * tb
    w[half:half + b2, 6] = natsq
    w[half + b2:, 6] = NEG_BIG
    return w, half


# ----------------------------- Pallas kernel -----------------------------
def lab_loss_kernel(img_ref, gt_ref, mxyz_ref, mlab_ref, bias_ref, w_ref, out_ref,
                    *, tile, hw, half, ragged):
    # Stack img & gt channels: rows [R_i, G_i, B_i, R_g, G_g, B_g] x tile pixels.
    c = jnp.concatenate([img_ref[...], gt_ref[...]], axis=0)             # (6, tile)

    # sRGB linearization on all 6 channels at once (6/8 sublane occupancy).
    lin = jnp.where(c > 0.04045,
                    jnp.exp(2.4 * jnp.log(jnp.maximum((c + 0.055) / 1.055, 1e-12))),
                    c * (1.0 / 12.92))

    # RGB -> (white-point scaled) XYZ for both images: block-diagonal 6x6 on MXU.
    xyz = jnp.dot(mxyz_ref[...], lin, preferred_element_type=jnp.float32)

    # CIELAB f() on all 6 rows.
    f = jnp.where(xyz > 0.008856,
                  jnp.exp((1.0 / 3.0) * jnp.log(jnp.maximum(xyz, 1e-12))),
                  7.787 * xyz + 16.0 / 116.0)

    # rows [L_i, A_i, B_i, L_g, A_g, B_g, 1]; clip leaves the ones row at 1.
    lab = jnp.dot(mlab_ref[...], f, preferred_element_type=jnp.float32) + bias_ref[...]
    lab = jnp.clip(lab, VMIN, VMAX)

    # Tail mask only when the pixel axis is ragged (static gate).
    valid = None
    if ragged:
        lane = jax.lax.broadcasted_iota(jnp.int32, (1, tile), 1)
        valid = (pl.program_id(1) * tile + lane) < hw

    # L-channel L1 (per-pixel; reduced below).
    l1 = jnp.abs(lab[0:1, :] - lab[3:4, :])
    if valid is not None:
        l1 = jnp.where(valid, l1, 0.0)

    # Fused bin logits for img and gt in ONE MXU matmul:
    #   rows [0, 49)          img logits     rows [49, half)          -BIG pad
    #   rows [half, half+49)  gt  logits     rows [half+49, 2*half)   -BIG pad
    s = jnp.dot(w_ref[...], lab, preferred_element_type=jnp.float32)     # (2*half, tile)
    s_i = s[0:half, :]
    s_g = s[half:, :]

    # p-branch in log domain: log(clip(softmax(s_i), 1e-3, .999)) == clip(log_softmax, ...)
    m_i = jnp.max(s_i, axis=0, keepdims=True)
    lse_i = m_i + jnp.log(jnp.sum(jnp.exp(s_i - m_i), axis=0, keepdims=True))
    logp = jnp.clip(s_i - lse_i, LOG_LO, LOG_HI)          # pad rows clip to LOG_LO

    # q-branch + cross entropy without materializing q:
    #   ce = -(1/sum(e_g)) * sum(e_g * logp);  pad rows of e_g are exactly 0.
    m_g = jnp.max(s_g, axis=0, keepdims=True)
    e_g = jnp.exp(s_g - m_g)
    z_inv = pl.reciprocal(jnp.sum(e_g, axis=0, keepdims=True), approx=True)
    ce = -jnp.sum(e_g * logp, axis=0, keepdims=True) * z_inv
    if valid is not None:
        ce = jnp.where(valid, ce, 0.0)

    # Per-block partial sums into this block's own lane-dense (8,128) output:
    # lane 0 = L1 partial, lane 1 = CE partial.  Grid stays fully "parallel".
    l1_sum = jnp.sum(l1)
    ce_sum = jnp.sum(ce)
    lane8 = jax.lax.broadcasted_iota(jnp.int32, (8, 128), 1)
    out_ref[...] = jnp.where(lane8 == 0, l1_sum,
                             jnp.where(lane8 == 1, ce_sum, 0.0))


# ----------------------------- wrapper -----------------------------
def _pick_tile(hw, batch, requested):
    requested = max(128, min(requested, MAX_TILE))
    if hw <= requested:
        tile = hw                                  # block == full dim (always legal)
    else:
        tile = _round_up(requested, 128)
    # v7x megacore: ensure the parallel grid has >= 2 steps when there is enough work.
    if batch * _cdiv(hw, tile) < 2 and hw >= 512:
        tile = _round_up(_cdiv(hw, 2), 128)
    return tile


def lab_loss_pallas(img, gt, *, tile=MAX_TILE, weight=WEIGHT):
    """img, gt: (B, 3, H, W) float32 RGB in [0,1] (NCHW). Returns scalar loss."""
    B, C, H, W = img.shape
    assert C == 3 and gt.shape == img.shape
    hw = H * W
    n = B * hw

    # Free views (no HBM reshuffle): NCHW -> (B, 3, H*W).
    img3 = jnp.asarray(img, jnp.float32).reshape(B, 3, hw)
    gt3 = jnp.asarray(gt, jnp.float32).reshape(B, 3, hw)

    t = _pick_tile(hw, B, tile)
    nb = _cdiv(hw, t)
    ragged = (nb * t != hw)

    m_xyz, m_lab7, bias7 = _build_color_matrices()
    w112, half = _build_logits_weights()

    kernel = functools.partial(lab_loss_kernel, tile=t, hw=hw, half=half, ragged=ragged)

    part = pl.pallas_call(
        kernel,
        out_shape=jax.ShapeDtypeStruct((B, nb, 8, 128), jnp.float32),
        grid=(B, nb),
        in_specs=[
            pl.BlockSpec((None, 3, t), lambda b, i: (b, 0, i)),
            pl.BlockSpec((None, 3, t), lambda b, i: (b, 0, i)),
            pl.BlockSpec((6, 6), lambda b, i: (0, 0)),
            pl.BlockSpec((7, 6), lambda b, i: (0, 0)),
            pl.BlockSpec((7, 1), lambda b, i: (0, 0)),
            pl.BlockSpec(w112.shape, lambda b, i: (0, 0)),
        ],
        out_specs=pl.BlockSpec((None, None, 8, 128), lambda b, i: (b, i, 0, 0)),
        compiler_params=pltpu.CompilerParams(
            dimension_semantics=("parallel", "parallel"),
            vmem_limit_bytes=VMEM_LIMIT,
        ),
    )(img3, gt3,
      jnp.asarray(m_xyz), jnp.asarray(m_lab7), jnp.asarray(bias7), jnp.asarray(w112))

    loss_l = jnp.sum(part[:, :, 0, 0]) / n        # mean over B*H*W
    loss_ab = jnp.sum(part[:, :, 0, 1]) / B       # sum over (bins,H,W), mean over B
    return loss_l + weight * loss_ab


# ----------------------------- pure-JAX reference -----------------------------
def _safe_pow(x, p):
    return jnp.exp(p * jnp.log(jnp.maximum(x, 1e-12)))


def _rgb2lab(r, g, b):
    def lin(c):
        return jnp.where(c > 0.04045, _safe_pow((c + 0.055) / 1.055, 2.4), c / 12.92)

    rl, gl, bl = lin(r), lin(g), lin(b)
    x = 0.412453 * rl + 0.357580 * gl + 0.180423 * bl
    y = 0.212671 * rl + 0.715160 * gl + 0.072169 * bl
    z = 0.019334 * rl + 0.119193 * gl + 0.950227 * bl
    x = x / 0.95047
    z = z / 1.08883

    def f(t):
        return jnp.where(t > 0.008856, _safe_pow(t, 1.0 / 3.0), 7.787 * t + 16.0 / 116.0)

    fx, fy, fz = f(x), f(y), f(z)
    L = 116.0 * fy - 16.0
    A = 500.0 * (fx - fy)
    B = 200.0 * (fy - fz)
    return L, A, B


def lab_loss_ref(img, gt):
    def rgb2lab_nchw(x):
        L, A, B = _rgb2lab(x[:, 0], x[:, 1], x[:, 2])
        return jnp.stack([L, A, B], axis=1)

    lab_img = jnp.clip(rgb2lab_nchw(img), VMIN, VMAX)
    lab_gt = jnp.clip(rgb2lab_nchw(gt), VMIN, VMAX)
    loss_l = jnp.mean(jnp.abs(lab_img[:, 0] - lab_gt[:, 0]))

    ta, tb = _quant_ab_centers()
    tab = jnp.asarray(np.stack([ta, tb], axis=1), dtype=jnp.float32)
    tab = tab.reshape(1, LEVELS * LEVELS, 2, 1, 1)

    def h2d(x):
        d = jnp.sum((x[:, None] - tab) ** 2, axis=2)       # (B, 49, H, W)
        return jax.nn.softmax(-ALPHA * d, axis=1)

    p = jnp.clip(h2d(lab_img[:, 1:]), 0.001, 0.999)
    q = h2d(lab_gt[:, 1:])
    loss_ab = jnp.mean(jnp.sum(-q * jnp.log(p), axis=(1, 2, 3)))
    return loss_l + WEIGHT * loss_ab


if __name__ == "__main__":
    key = jax.random.PRNGKey(0)
    k1, k2 = jax.random.split(key)
    B, C, H, W = 2, 3, 16, 16
    img = jax.random.uniform(k1, (B, C, H, W), dtype=jnp.float32)
    gt = jax.random.uniform(k2, (B, C, H, W), dtype=jnp.float32)

    out = jax.block_until_ready(lab_loss_pallas(img, gt))
    ref = jax.block_until_ready(lab_loss_ref(img, gt))

    assert jnp.isfinite(out), "non-finite loss"
    assert jnp.allclose(out, ref, rtol=5e-3, atol=1e-3), (out, ref)
    print("KERNEL_OK")
</pallas_src>

<mosaic_0001>
module attributes {stable_mosaic.version = 11 : i64} {
  func.func @lab_loss_kernel(%arg0: i32, %arg1: i32, %arg2: memref<1x3x256xf32, #tpu.memory_space<vmem>>, %arg3: memref<1x3x256xf32, #tpu.memory_space<vmem>>, %arg4: memref<6x6xf32, #tpu.memory_space<vmem>>, %arg5: memref<7x6xf32, #tpu.memory_space<vmem>>, %arg6: memref<7x1xf32, #tpu.memory_space<vmem>>, %arg7: memref<112x7xf32, #tpu.memory_space<vmem>>, %arg8: memref<1x1x8x128xf32, #tpu.memory_space<vmem>>) attributes {dimension_semantics = [#tpu.dimension_semantics<parallel>, #tpu.dimension_semantics<parallel>], iteration_bounds = array<i64: 2, 1>, scalar_prefetch = 0 : i64, scratch_operands = 0 : i64, tpu.core_type = #tpu.core_type<tc>, window_params = [{transform_indices = @transform_0, window_bounds = array<i64: 1, 3, 256>}, {transform_indices = @transform_1, window_bounds = array<i64: 1, 3, 256>}, {pipeline_mode = #tpu.pipeline_mode<synchronous>, transform_indices = @transform_2, window_bounds = array<i64: 6, 6>}, {pipeline_mode = #tpu.pipeline_mode<synchronous>, transform_indices = @transform_3, window_bounds = array<i64: 7, 6>}, {pipeline_mode = #tpu.pipeline_mode<synchronous>, transform_indices = @transform_4, window_bounds = array<i64: 7, 1>}, {pipeline_mode = #tpu.pipeline_mode<synchronous>, transform_indices = @transform_5, window_bounds = array<i64: 112, 7>}, {transform_indices = @transform_6, window_bounds = array<i64: 1, 1, 8, 128>}]} {
    %c0 = arith.constant 0 : index
    %c0_0 = arith.constant 0 : index
    %c0_1 = arith.constant 0 : index
    %0 = vector.load %arg2[%c0, %c0_0, %c0_1] : memref<1x3x256xf32, #tpu.memory_space<vmem>>, vector<1x3x256xf32>
    %1 = vector.shape_cast %0 : vector<1x3x256xf32> to vector<3x256xf32>
    %c0_2 = arith.constant 0 : index
    %c0_3 = arith.constant 0 : index
    %c0_4 = arith.constant 0 : index
    %2 = vector.load %arg3[%c0_2, %c0_3, %c0_4] : memref<1x3x256xf32, #tpu.memory_space<vmem>>, vector<1x3x256xf32>
    %3 = vector.shape_cast %2 : vector<1x3x256xf32> to vector<3x256xf32>
    %4 = tpu.concatenate %1, %3 in 0 : vector<3x256xf32>, vector<3x256xf32> -> vector<6x256xf32>
    %cst = arith.constant 4.045000e-02 : f32
    %5 = vector.broadcast %cst : f32 to vector<6x256xf32>
    %6 = arith.cmpf ogt, %4, %5 : vector<6x256xf32>
    %cst_5 = arith.constant 5.500000e-02 : f32
    %7 = vector.broadcast %cst_5 : f32 to vector<6x256xf32>
    %8 = arith.addf %4, %7 : vector<6x256xf32>
    %cst_6 = arith.constant 1.055000e+00 : f32
    %9 = vector.broadcast %cst_6 : f32 to vector<6x256xf32>
    %10 = arith.divf %8, %9 : vector<6x256xf32>
    %cst_7 = arith.constant 9.99999996E-13 : f32
    %11 = vector.broadcast %cst_7 : f32 to vector<6x256xf32>
    %12 = arith.maximumf %10, %11 : vector<6x256xf32>
    %13 = math.log %12 : vector<6x256xf32>
    %cst_8 = arith.constant 2.400000e+00 : f32
    %14 = vector.broadcast %cst_8 : f32 to vector<6x256xf32>
    %15 = arith.mulf %14, %13 : vector<6x256xf32>
    %16 = math.exp %15 : vector<6x256xf32>
    %cst_9 = arith.constant 0.0773993805 : f32
    %17 = vector.broadcast %cst_9 : f32 to vector<6x256xf32>
    %18 = arith.mulf %4, %17 : vector<6x256xf32>
    %19 = arith.select %6, %16, %18 : vector<6x256xi1>, vector<6x256xf32>
    %c0_10 = arith.constant 0 : index
    %c0_11 = arith.constant 0 : index
    %20 = vector.load %arg4[%c0_10, %c0_11] : memref<6x6xf32, #tpu.memory_space<vmem>>, vector<6x6xf32>
    %cst_12 = arith.constant dense<0.000000e+00> : vector<6x256xf32>
    %21 = tpu.matmul %20, %19, %cst_12 {dimension_numbers = #tpu.dot_dimension_numbers<[1], [0], [0], [1], [0, 0, 1, 1], [], []>} : vector<6x6xf32>, vector<6x256xf32>, vector<6x256xf32> -> vector<6x256xf32>
    %cst_13 = arith.constant 8.856000e-03 : f32
    %22 = vector.broadcast %cst_13 : f32 to vector<6x256xf32>
    %23 = arith.cmpf ogt, %21, %22 : vector<6x256xf32>
    %cst_14 = arith.constant 9.99999996E-13 : f32
    %24 = vector.broadcast %cst_14 : f32 to vector<6x256xf32>
    %25 = arith.maximumf %21, %24 : vector<6x256xf32>
    %26 = math.log %25 : vector<6x256xf32>
    %cst_15 = arith.constant 0.333333343 : f32
    %27 = vector.broadcast %cst_15 : f32 to vector<6x256xf32>
    %28 = arith.mulf %27, %26 : vector<6x256xf32>
    %29 = math.exp %28 : vector<6x256xf32>
    %cst_16 = arith.constant 7.787000e+00 : f32
    %30 = vector.broadcast %cst_16 : f32 to vector<6x256xf32>
    %31 = arith.mulf %30, %21 : vector<6x256xf32>
    %cst_17 = arith.constant 0.137931034 : f32
    %32 = vector.broadcast %cst_17 : f32 to vector<6x256xf32>
    %33 = arith.addf %31, %32 : vector<6x256xf32>
    %34 = arith.select %23, %29, %33 : vector<6x256xi1>, vector<6x256xf32>
    %c0_18 = arith.constant 0 : index
    %c0_19 = arith.constant 0 : index
    %35 = vector.load %arg5[%c0_18, %c0_19] : memref<7x6xf32, #tpu.memory_space<vmem>>, vector<7x6xf32>
    %cst_20 = arith.constant dense<0.000000e+00> : vector<7x256xf32>
    %36 = tpu.matmul %35, %34, %cst_20 {dimension_numbers = #tpu.dot_dimension_numbers<[1], [0], [0], [1], [0, 0, 1, 1], [], []>} : vector<7x6xf32>, vector<6x256xf32>, vector<7x256xf32> -> vector<7x256xf32>
    %c0_21 = arith.constant 0 : index
    %c0_22 = arith.constant 0 : index
    %37 = vector.load %arg6[%c0_21, %c0_22] : memref<7x1xf32, #tpu.memory_space<vmem>>, vector<7x1xf32>
    %38 = vector.broadcast %37 : vector<7x1xf32> to vector<7x256xf32>
    %39 = arith.addf %36, %38 : vector<7x256xf32>
    %cst_23 = arith.constant -8.000000e+01 : f32
    %cst_24 = arith.constant 8.000000e+01 : f32
    %40 = vector.broadcast %cst_23 : f32 to vector<7x256xf32>
    %41 = arith.maximumf %40, %39 : vector<7x256xf32>
    %42 = vector.broadcast %cst_24 : f32 to vector<7x256xf32>
    %43 = arith.minimumf %42, %41 : vector<7x256xf32>
    %44 = vector.extract_strided_slice %43 {offsets = [0, 0], sizes = [1, 256], strides = [1, 1]} : vector<7x256xf32> to vector<1x256xf32>
    %45 = vector.extract_strided_slice %43 {offsets = [3, 0], sizes = [1, 256], strides = [1, 1]} : vector<7x256xf32> to vector<1x256xf32>
    %46 = arith.subf %44, %45 : vector<1x256xf32>
    %47 = math.absf %46 : vector<1x256xf32>
    %c0_25 = arith.constant 0 : index
    %c0_26 = arith.constant 0 : index
    %48 = vector.load %arg7[%c0_25, %c0_26] : memref<112x7xf32, #tpu.memory_space<vmem>>, vector<112x7xf32>
    %cst_27 = arith.constant dense<0.000000e+00> : vector<112x256xf32>
    %49 = tpu.matmul %48, %43, %cst_27 {dimension_numbers = #tpu.dot_dimension_numbers<[1], [0], [0], [1], [0, 0, 1, 1], [], []>} : vector<112x7xf32>, vector<7x256xf32>, vector<112x256xf32> -> vector<112x256xf32>
    %50 = vector.extract_strided_slice %49 {offsets = [0, 0], sizes = [56, 256], strides = [1, 1]} : vector<112x256xf32> to vector<56x256xf32>
    %51 = vector.extract_strided_slice %49 {offsets = [56, 0], sizes = [56, 256], strides = [1, 1]} : vector<112x256xf32> to vector<56x256xf32>
    %cst_28 = arith.constant dense<0xFF800000> : vector<256xf32>
    %52 = vector.multi_reduction <maximumf>, %50, %cst_28 [0] : vector<56x256xf32> to vector<256xf32>
    %53 = vector.shape_cast %52 : vector<256xf32> to vector<1x256xf32>
    %54 = vector.broadcast %53 : vector<1x256xf32> to vector<56x256xf32>
    %55 = arith.subf %50, %54 : vector<56x256xf32>
    %56 = math.exp %55 : vector<56x256xf32>
    %cst_29 = arith.constant dense<0.000000e+00> : vector<256xf32>
    %57 = vector.multi_reduction <add>, %56, %cst_29 [0] : vector<56x256xf32> to vector<256xf32>
    %58 = vector.shape_cast %57 : vector<256xf32> to vector<1x256xf32>
    %59 = math.log %58 : vector<1x256xf32>
    %60 = arith.addf %53, %59 : vector<1x256xf32>
    %61 = vector.broadcast %60 : vector<1x256xf32> to vector<56x256xf32>
    %62 = arith.subf %50, %61 : vector<56x256xf32>
    %cst_30 = arith.constant -6.90775537 : f32
    %cst_31 = arith.constant -0.00100050028 : f32
    %63 = vector.broadcast %cst_30 : f32 to vector<56x256xf32>
    %64 = arith.maximumf %63, %62 : vector<56x256xf32>
    %65 = vector.broadcast %cst_31 : f32 to vector<56x256xf32>
    %66 = arith.minimumf %65, %64 : vector<56x256xf32>
    %cst_32 = arith.constant dense<0xFF800000> : vector<256xf32>
    %67 = vector.multi_reduction <maximumf>, %51, %cst_32 [0] : vector<56x256xf32> to vector<256xf32>
    %68 = vector.shape_cast %67 : vector<256xf32> to vector<1x256xf32>
    %69 = vector.broadcast %68 : vector<1x256xf32> to vector<56x256xf32>
    %70 = arith.subf %51, %69 : vector<56x256xf32>
    %71 = math.exp %70 : vector<56x256xf32>
    %cst_33 = arith.constant dense<0.000000e+00> : vector<256xf32>
    %72 = vector.multi_reduction <add>, %71, %cst_33 [0] : vector<56x256xf32> to vector<256xf32>
    %73 = vector.shape_cast %72 : vector<256xf32> to vector<1x256xf32>
    %74 = tpu.reciprocal %73 {approx = true} : vector<1x256xf32> -> vector<1x256xf32>
    %75 = arith.mulf %71, %66 : vector<56x256xf32>
    %cst_34 = arith.constant dense<0.000000e+00> : vector<256xf32>
    %76 = vector.multi_reduction <add>, %75, %cst_34 [0] : vector<56x256xf32> to vector<256xf32>
    %77 = vector.shape_cast %76 : vector<256xf32> to vector<1x256xf32>
    %cst_35 = arith.constant 0.000000e+00 : f32
    %78 = vector.broadcast %cst_35 : f32 to vector<1x256xf32>
    %79 = arith.subf %78, %77 : vector<1x256xf32>
    %80 = arith.mulf %79, %74 : vector<1x256xf32>
    %81 = vector.shape_cast %47 : vector<1x256xf32> to vector<1x1x256xf32>
    %cst_36 = arith.constant dense<0.000000e+00> : vector<1xf32>
    %82 = vector.multi_reduction <add>, %81, %cst_36 [1, 2] : vector<1x1x256xf32> to vector<1xf32>
    %83 = vector.shape_cast %82 : vector<1xf32> to vector<1x1x1xf32>
    %84 = vector.extract %83[0, 0, 0] : f32 from vector<1x1x1xf32>
    %85 = vector.shape_cast %80 : vector<1x256xf32> to vector<1x1x256xf32>
    %cst_37 = arith.constant dense<0.000000e+00> : vector<1xf32>
    %86 = vector.multi_reduction <add>, %85, %cst_37 [1, 2] : vector<1x1x256xf32> to vector<1xf32>
    %87 = vector.shape_cast %86 : vector<1xf32> to vector<1x1x1xf32>
    %88 = vector.extract %87[0, 0, 0] : f32 from vector<1x1x1xf32>
    %89 = tpu.iota {dimensions = array<i32: 1>} : vector<8x128xi32>
    %c0_i32 = arith.constant 0 : i32
    %90 = vector.broadcast %c0_i32 : i32 to vector<8x128xi32>
    %91 = arith.cmpi eq, %89, %90 : vector<8x128xi32>
    %c1_i32 = arith.constant 1 : i32
    %92 = vector.broadcast %c1_i32 : i32 to vector<8x128xi32>
    %93 = arith.cmpi eq, %89, %92 : vector<8x128xi32>
    %cst_38 = arith.constant 0.000000e+00 : f32
    %94 = vector.broadcast %88 : f32 to vector<8x128xf32>
    %95 = vector.broadcast %cst_38 : f32 to vector<8x128xf32>
    %96 = arith.select %93, %94, %95 : vector<8x128xi1>, vector<8x128xf32>
    %97 = vector.broadcast %84 : f32 to vector<8x128xf32>
    %98 = arith.select %91, %97, %96 : vector<8x128xi1>, vector<8x128xf32>
    %c0_39 = arith.constant 0 : index
    %c0_40 = arith.constant 0 : index
    %c0_41 = arith.constant 0 : index
    %c0_42 = arith.constant 0 : index
    %99 = vector.load %arg8[%c0_39, %c0_40, %c0_41, %c0_42] : memref<1x1x8x128xf32, #tpu.memory_space<vmem>>, vector<1x1x8x128xf32>
    %100 = vector.shape_cast %99 : vector<1x1x8x128xf32> to vector<8x128xf32>
    %101 = vector.shape_cast %98 : vector<8x128xf32> to vector<1x1x8x128xf32>
    tpu.vector_store %arg8[%c0_39, %c0_40, %c0_41, %c0_42], %101 {strides = array<i32>} : memref<1x1x8x128xf32, #tpu.memory_space<vmem>>, vector<1x1x8x128xf32>,
    return
  }
  func.func @transform_0(%arg0: i32, %arg1: i32) -> (i32, i32, i32) {
    %c0_i32 = arith.constant 0 : i32
    %c0_i32_0 = arith.constant 0 : i32
    return %arg0, %c0_i32, %arg1 : i32, i32, i32
  }
  func.func @transform_1(%arg0: i32, %arg1: i32) -> (i32, i32, i32) {
    %c0_i32 = arith.constant 0 : i32
    %c0_i32_0 = arith.constant 0 : i32
    return %arg0, %c0_i32, %arg1 : i32, i32, i32
  }
  func.func @transform_2(%arg0: i32, %arg1: i32) -> (i32, i32) {
    %c0_i32 = arith.constant 0 : i32
    %c0_i32_0 = arith.constant 0 : i32
    %c0_i32_1 = arith.constant 0 : i32
    return %c0_i32, %c0_i32_0 : i32, i32
  }
  func.func @transform_3(%arg0: i32, %arg1: i32) -> (i32, i32) {
    %c0_i32 = arith.constant 0 : i32
    %c0_i32_0 = arith.constant 0 : i32
    %c0_i32_1 = arith.constant 0 : i32
    return %c0_i32, %c0_i32_0 : i32, i32
  }
  func.func @transform_4(%arg0: i32, %arg1: i32) -> (i32, i32) {
    %c0_i32 = arith.constant 0 : i32
    %c0_i32_0 = arith.constant 0 : i32
    %c0_i32_1 = arith.constant 0 : i32
    return %c0_i32, %c0_i32_0 : i32, i32
  }
  func.func @transform_5(%arg0: i32, %arg1: i32) -> (i32, i32) {
    %c0_i32 = arith.constant 0 : i32
    %c0_i32_0 = arith.constant 0 : i32
    %c0_i32_1 = arith.constant 0 : i32
    return %c0_i32, %c0_i32_0 : i32, i32
  }
  func.func @transform_6(%arg0: i32, %arg1: i32) -> (i32, i32, i32, i32) {
    %c0_i32 = arith.constant 0 : i32
    %c0_i32_0 = arith.constant 0 : i32
    %c0_i32_1 = arith.constant 0 : i32
    return %arg0, %arg1, %c0_i32, %c0_i32_0 : i32, i32, i32, i32
  }
}

</mosaic_0001>

<llo_original>
// kernel: tpu_custom_call.1
$region0: #{tpu_custom_call.1}
  #allocation0 [shape = 'u32[]', space=smem, size = 0x4, offset = 0x4, fixed_abs, tag = 'smem constant byte address 0x4 - core index']
  #allocation1 [shape = 'u32[72,128]{1,0:T(1,128)}', space=vmem, size = 0x9000, scoped, tag = 'internal scratch']
  %s0 = inlined_call_operand.vmem [shape: f32[2,3,256], index: 0, kind: input, shape index: {}]
  %s1 = inlined_call_operand.vmem [shape: f32[2,3,256], index: 1, kind: input, shape index: {}]
  %s2 = inlined_call_operand.vmem [shape: f32[6,6], index: 2, kind: input, shape index: {}]
  %s3 = inlined_call_operand.vmem [shape: f32[7,6], index: 3, kind: input, shape index: {}]
  %s4 = inlined_call_operand.vmem [shape: f32[7,1], index: 4, kind: input, shape index: {}]
  %s5 = inlined_call_operand.vmem [shape: f32[112,7], index: 5, kind: input, shape index: {}]
  %s6 = inlined_call_operand.hbm [shape: f32[2,1,8,128], index: 6, kind: output, shape index: {}]
  %s7 = sld [smem:[#allocation0]]
  $region57: #{tpu_custom_call.1} parent=0
    _
  %s9 = ssub.s32 1, %s7
  %s10 = scalar_select 0, %s9, %s7
  $region1: #{tpu_custom_call.1} parent=0
    #allocation2 [shape = 'u8[8192]{0}', space=vmem, size = 0x2000, scoped, tag = 'output window, operand 0']
    #allocation3 [shape = 's32[2]{0}', space=sflag, size = 0x8, scoped, tag = 'scoped memory for tpu_custom_call.1']
    %11 = vsyncpa [#allocation3], 0
    %s12 = scalar_lea.sflag [#allocation3], 1
    %13 = vsyncpa %s12, 0
    loop: start=0, step=1, limit=4
    $region2: #{tpu_custom_call.1} parent=1 // loop_pre_header
      _
    $region3: #{tpu_custom_call.1} parent=1 // loop_header
      %s15 = sphi 0, %s19
      %p16 = scmp.ge.s32.totalorder %s15, 4
      %s22 = sphi 0, %s34
      %s23 = sphi 0, %s30
      %s24 = sphi 0, %s22
      %s25 = sphi 0, %s23
      %s26 = sphi 0, %s24
      %s27 = sphi 0, %s25
      %s39 = sphi 0, %s41
      %s42 = sphi 0, %s39
      %s43 = sphi 0, %s42
      %s59 = sphi 0, %s43
      %s67 = sphi 0, %s69
      %s70 = sphi 0, %s67
      %s71 = sphi 0, %s70
      %s87 = sphi 0, %s71
      %s91 = sphi 0, %s91
      %s93 = sphi 0, %s91
      %s94 = sphi 0, %s93
      %s108 = sphi 0, %s94
      %s112 = sphi 0, %s112
      %s114 = sphi 0, %s112
      %s115 = sphi 0, %s114
      %s129 = sphi 0, %s115
      %s133 = sphi 0, %s133
      %s135 = sphi 0, %s133
      %s136 = sphi 0, %s135
      %s150 = sphi 0, %s136
      %s154 = sphi 0, %s154
      %s156 = sphi 0, %s154
      %s157 = sphi 0, %s156
      %s171 = sphi 0, %s157
      %s179 = sphi 0, %s181
      %s182 = sphi 0, %s179
      %s183 = sphi 0, %s182
      %s199 = sphi 0, %s183
    $region4: #{tpu_custom_call.1} parent=1 // loop_header_branch
      %18 = sbr.rel (%p16) target = $region8
    $region5: #{tpu_custom_call.1} parent=1 // loop_body
      %s20 = ssub.s32 %s15, 1
      %s21 = ssub.s32 %s15, 2
      %s28 = sadd.s32 1, %s23
      %p29 = scmp.ge.s32.totalorder %s28, 1
      %s30 = scalar_select %p29, 0, %s28
      %s31 = sadd.s32 1, %s22
      %s32 = scalar_select %p29, %s31, %s22
      %p33 = scmp.ge.s32.totalorder %s32, 2
      %s34 = scalar_select %p33, 0, %s32
      %s35 = ssub.s32 %s22, %s34
      %s36 = ssub.s32 %s23, %s30
      %s37 = sor.u32 %s35, %s36
      %p38 = scmp.eq.s32.totalorder %s37, 0
      %s40 = sadd.s32 %s39, 1
      %s41 = scalar_select %p38, %s39, %s40
      %p44 = pneg %p38
      %p45 = scmp.eq.s32.totalorder %s15, 1
      %p46 = por %p44, %p45
      %p47 = scmp.ne.s32.totalorder %s39, %s42
      %p48 = scmp.eq.s32.totalorder %s15, 0
      %p49 = por %p47, %p48
      %p50 = scmp.ne.s32.totalorder %s39, %s42
      %p51 = scmp.eq.s32.totalorder %s20, 1
      %p52 = por %p50, %p51
      %p53 = scmp.ne.s32.totalorder %s42, %s43
      %p54 = scmp.eq.s32.totalorder %s20, 0
      %p55 = por %p53, %p54
      %p56 = scmp.ne.s32.totalorder %s42, %s43
      %p57 = scmp.eq.s32.totalorder %s21, 1
      %p58 = por %p56, %p57
      %p60 = scmp.ne.s32.totalorder %s43, %s59
      %p61 = scmp.eq.s32.totalorder %s21, 0
      %p62 = por %p60, %p61
      %s63 = ssub.s32 %s22, %s34
      %s64 = ssub.s32 %s23, %s30
      %s65 = sor.u32 %s63, %s64
      %p66 = scmp.eq.s32.totalorder %s65, 0
      %s68 = sadd.s32 %s67, 1
      %s69 = scalar_select %p66, %s67, %s68
      %p72 = pneg %p66
      %p73 = scmp.eq.s32.totalorder %s15, 1
      %p74 = por %p72, %p73
      %p75 = scmp.ne.s32.totalorder %s67, %s70
      %p76 = scmp.eq.s32.totalorder %s15, 0
      %p77 = por %p75, %p76
      %p78 = scmp.ne.s32.totalorder %s67, %s70
      %p79 = scmp.eq.s32.totalorder %s20, 1
      %p80 = por %p78, %p79
      %p81 = scmp.ne.s32.totalorder %s70, %s71
      %p82 = scmp.eq.s32.totalorder %s20, 0
      %p83 = por %p81, %p82
      %p84 = scmp.ne.s32.totalorder %s70, %s71
      %p85 = scmp.eq.s32.totalorder %s21, 1
      %p86 = por %p84, %p85
      %p88 = scmp.ne.s32.totalorder %s71, %s87
      %p89 = scmp.eq.s32.totalorder %s21, 0
      %p90 = por %p88, %p89
      %s92 = sadd.s32 %s91, 1
      %p95 = scmp.eq.s32.totalorder %s15, 1
      %p96 = scmp.ne.s32.totalorder %s91, %s93
      %p97 = scmp.eq.s32.totalorder %s15, 0
      %p98 = por %p96, %p97
      %p99 = scmp.ne.s32.totalorder %s91, %s93
      %p100 = scmp.eq.s32.totalorder %s20, 1
      %p101 = por %p99, %p100
      %p102 = scmp.ne.s32.totalorder %s93, %s94
      %p103 = scmp.eq.s32.totalorder %s20, 0
      %p104 = por %p102, %p103
      %p105 = scmp.ne.s32.totalorder %s93, %s94
      %p106 = scmp.eq.s32.totalorder %s21, 1
      %p107 = por %p105, %p106
      %p109 = scmp.ne.s32.totalorder %s94, %s108
      %p110 = scmp.eq.s32.totalorder %s21, 0
      %p111 = por %p109, %p110
      %s113 = sadd.s32 %s112, 1
      %p116 = scmp.eq.s32.totalorder %s15, 1
      %p117 = scmp.ne.s32.totalorder %s112, %s114
      %p118 = scmp.eq.s32.totalorder %s15, 0
      %p119 = por %p117, %p118
      %p120 = scmp.ne.s32.totalorder %s112, %s114
      %p121 = scmp.eq.s32.totalorder %s20, 1
      %p122 = por %p120, %p121
      %p123 = scmp.ne.s32.totalorder %s114, %s115
      %p124 = scmp.eq.s32.totalorder %s20, 0
      %p125 = por %p123, %p124
      %p126 = scmp.ne.s32.totalorder %s114, %s115
      %p127 = scmp.eq.s32.totalorder %s21, 1
      %p128 = por %p126, %p127
      %p130 = scmp.ne.s32.totalorder %s115, %s129
      %p131 = scmp.eq.s32.totalorder %s21, 0
      %p132 = por %p130, %p131
      %s134 = sadd.s32 %s133, 1
      %p137 = scmp.eq.s32.totalorder %s15, 1
      %p138 = scmp.ne.s32.totalorder %s133, %s135
      %p139 = scmp.eq.s32.totalorder %s15, 0
      %p140 = por %p138, %p139
      %p141 = scmp.ne.s32.totalorder %s133, %s135
      %p142 = scmp.eq.s32.totalorder %s20, 1
      %p143 = por %p141, %p142
      %p144 = scmp.ne.s32.totalorder %s135, %s136
      %p145 = scmp.eq.s32.totalorder %s20, 0
      %p146 = por %p144, %p145
      %p147 = scmp.ne.s32.totalorder %s135, %s136
      %p148 = scmp.eq.s32.totalorder %s21, 1
      %p149 = por %p147, %p148
      %p151 = scmp.ne.s32.totalorder %s136, %s150
      %p152 = scmp.eq.s32.totalorder %s21, 0
      %p153 = por %p151, %p152
      %s155 = sadd.s32 %s154, 1
      %p158 = scmp.eq.s32.totalorder %s15, 1
      %p159 = scmp.ne.s32.totalorder %s154, %s156
      %p160 = scmp.eq.s32.totalorder %s15, 0
      %p161 = por %p159, %p160
      %p162 = scmp.ne.s32.totalorder %s154, %s156
      %p163 = scmp.eq.s32.totalorder %s20, 1
      %p164 = por %p162, %p163
      %p165 = scmp.ne.s32.totalorder %s156, %s157
      %p166 = scmp.eq.s32.totalorder %s20, 0
      %p167 = por %p165, %p166
      %p168 = scmp.ne.s32.totalorder %s156, %s157
      %p169 = scmp.eq.s32.totalorder %s21, 1
      %p170 = por %p168, %p169
      %p172 = scmp.ne.s32.totalorder %s157, %s171
      %p173 = scmp.eq.s32.totalorder %s21, 0
      %p174 = por %p172, %p173
      %s175 = ssub.s32 %s22, %s34
      %s176 = ssub.s32 %s23, %s30
      %s177 = sor.u32 %s175, %s176
      %p178 = scmp.eq.s32.totalorder %s177, 0
      %s180 = sadd.s32 %s179, 1
      %s181 = scalar_select %p178, %s179, %s180
      %p184 = pneg %p178
      %p185 = scmp.eq.s32.totalorder %s15, 1
      %p186 = por %p184, %p185
      %p187 = scmp.ne.s32.totalorder %s179, %s182
      %p188 = scmp.eq.s32.totalorder %s15, 0
      %p189 = por %p187, %p188
      %p190 = scmp.ne.s32.totalorder %s179, %s182
      %p191 = scmp.eq.s32.totalorder %s20, 1
      %p192 = por %p190, %p191
      %p193 = scmp.ne.s32.totalorder %s182, %s183
      %p194 = scmp.eq.s32.totalorder %s20, 0
      %p195 = por %p193, %p194
      %p196 = scmp.ne.s32.totalorder %s182, %s183
      %p197 = scmp.eq.s32.totalorder %s21, 1
      %p198 = por %p196, %p197
      %p200 = scmp.ne.s32.totalorder %s183, %s199
      %p201 = scmp.eq.s32.totalorder %s21, 0
      %p202 = por %p200, %p201
      %p203 = scmp.le.s32.totalorder 1, %s15
      %p204 = scmp.lt.s32.totalorder %s15, 3
      %p205 = pnand %p203, %p204
      %p206 = pneg %p205
      // Predicated region
      $region9: #{tpu_custom_call.1} parent=5 // pred_check
        _
      $region10: #{tpu_custom_call.1} parent=5 // pred_check_branch
        %208 = sbr.rel (%p205) target = $region12
      $region11: #{tpu_custom_call.1} parent=5 // pred_region
        %s209 = ssub.s32 %s15, 1
        // Predicated region
        $region13: #{tpu_custom_call.1} parent=11 // pred_check
          %p210 = pneg %p104
        $region14: #{tpu_custom_call.1} parent=11 // pred_check_branch
          %212 = sbr.rel (%p210) target = $region16
        $region15: #{tpu_custom_call.1} parent=11 // pred_region
          _
        $region16: #{tpu_custom_call.1} parent=11 // pred_fallthru
          _
        // Predicated region
        $region17: #{tpu_custom_call.1} parent=11 // pred_check
          %p213 = pneg %p125
        $region18: #{tpu_custom_call.1} parent=11 // pred_check_branch
          %215 = sbr.rel (%p213) target = $region20
        $region19: #{tpu_custom_call.1} parent=11 // pred_region
          _
        $region20: #{tpu_custom_call.1} parent=11 // pred_fallthru
          _
        // Predicated region
        $region21: #{tpu_custom_call.1} parent=11 // pred_check
          %p216 = pneg %p146
        $region22: #{tpu_custom_call.1} parent=11 // pred_check_branch
          %218 = sbr.rel (%p216) target = $region24
        $region23: #{tpu_custom_call.1} parent=11 // pred_region
          _
        $region24: #{tpu_custom_call.1} parent=11 // pred_fallthru
          _
        // Predicated region
        $region25: #{tpu_custom_call.1} parent=11 // pred_check
          %p219 = pneg %p167
        $region26: #{tpu_custom_call.1} parent=11 // pred_check_branch
          %221 = sbr.rel (%p219) target = $region28
        $region27: #{tpu_custom_call.1} parent=11 // pred_region
          _
        $region28: #{tpu_custom_call.1} parent=11 // pred_fallthru
          _
      $region12: #{tpu_custom_call.1} parent=5 // pred_fallthru
        _
      %p222 = scmp.lt.s32.totalorder %s15, 2
      // Predicated region
      $region29: #{tpu_custom_call.1} parent=5 // pred_check
        %p223 = pneg %p222
      $region30: #{tpu_custom_call.1} parent=5 // pred_check_branch
        %225 = sbr.rel (%p223) target = $region32
      $region31: #{tpu_custom_call.1} parent=5 // pred_region
        // Predicated region
        $region33: #{tpu_custom_call.1} parent=31 // pred_check
          %p226 = pneg %p49
        $region34: #{tpu_custom_call.1} parent=31 // pred_check_branch
          %228 = sbr.rel (%p226) target = $region36
        $region35: #{tpu_custom_call.1} parent=31 // pred_region
          %s229 = smul.u32 2, %s23
          %p230 = scmp.lt.s32.totalorder %s22, 1
          %s231 = scalar_select %p230, %s22, 1
          %p232 = scmp.lt.s32.totalorder %s229, 1
          %s233 = scalar_select %p232, %s229, 1
          %s234 = smul.addr %s231, 2
          %s235 = sadd.s32 %s233, %s234
          %s236 = smul.addr %s235, 4
          %s237 = scalar_lea.vmem %s0, %s236
          %s238 = smul.u32 2, %s23
        $region36: #{tpu_custom_call.1} parent=31 // pred_fallthru
          _
        // Predicated region
        $region37: #{tpu_custom_call.1} parent=31 // pred_check
          %p239 = pneg %p77
        $region38: #{tpu_custom_call.1} parent=31 // pred_check_branch
          %241 = sbr.rel (%p239) target = $region40
        $region39: #{tpu_custom_call.1} parent=31 // pred_region
          %s242 = smul.u32 2, %s23
          %p243 = scmp.lt.s32.totalorder %s22, 1
          %s244 = scalar_select %p243, %s22, 1
          %p245 = scmp.lt.s32.totalorder %s242, 1
          %s246 = scalar_select %p245, %s242, 1
          %s247 = smul.addr %s244, 2
          %s248 = sadd.s32 %s246, %s247
          %s249 = smul.addr %s248, 4
          %s250 = scalar_lea.vmem %s1, %s249
          %s251 = smul.u32 2, %s23
        $region40: #{tpu_custom_call.1} parent=31 // pred_fallthru
          _
      $region32: #{tpu_custom_call.1} parent=5 // pred_fallthru
        _
      %p252 = scmp.le.s32.totalorder 1, %s15
      %p253 = scmp.lt.s32.totalorder %s15, 3
      %p254 = pnand %p252, %p253
      %p255 = pneg %p254
      // Predicated region
      $region41: #{tpu_custom_call.1} parent=5 // pred_check
        _
      $region42: #{tpu_custom_call.1} parent=5 // pred_check_branch
        %257 = sbr.rel (%p254) target = $region44
      $region43: #{tpu_custom_call.1} parent=5 // pred_region
        %s258 = ssub.s32 %s15, 1
        %s259 = smul.u32 2, %s25
        %p260 = scmp.lt.s32.totalorder %s24, 1
        %s261 = scalar_select %p260, %s24, 1
        %p262 = scmp.lt.s32.totalorder %s259, 1
        %s263 = scalar_select %p262, %s259, 1
        %s264 = smul.addr %s261, 2
        %s265 = sadd.s32 %s263, %s264
        %s266 = smul.addr %s265, 4
        %s267 = scalar_lea.vmem %s0, %s266
        %p268 = pneg %p55
        %p269 = pneg %p52
        %s270 = smul.u32 2, %s25
        %p271 = scmp.lt.s32.totalorder %s24, 1
        %s272 = scalar_select %p271, %s24, 1
        %p273 = scmp.lt.s32.totalorder %s270, 1
        %s274 = scalar_select %p273, %s270, 1
        %s275 = smul.addr %s272, 2
        %s276 = sadd.s32 %s274, %s275
        %s277 = smul.addr %s276, 4
        %s278 = scalar_lea.vmem %s1, %s277
        %p279 = pneg %p83
        %p280 = pneg %p80
        %p281 = pneg %p104
        %p282 = pneg %p101
        %p283 = pneg %p125
        %p284 = pneg %p122
        %p285 = pneg %p146
        %p286 = pneg %p143
        %p287 = pneg %p167
        %p288 = pneg %p164
        %p289 = pneg %p195
        %p290 = pneg %p192
        %s291 = sand.u32 %s182, 1
        %s292 = scalar_lea.sflag [#allocation3], %s291
        %s293 = sand.u32 %s182, 1
        %s294 = smul.addr %s293, 8
        %s295 = scalar_lea.vmem [#allocation2], %s294
        %s296 = smul.u32 2, %s25
        %p297 = scmp.lt.s32.totalorder %s24, 1
        %s298 = scalar_select %p297, %s24, 1
        %p299 = scmp.lt.s32.totalorder %s296, 1
        %s300 = scalar_select %p299, %s296, 1
        %s301 = smul.addr %s298, 2
        %s302 = sadd.s32 %s300, %s301
        %s303 = smul.addr %s302, 4
        %s304 = scalar_lea.vmem %s0, %s303
        %s305 = smul.u32 2, %s25
        %s306 = smul.u32 2, %s25
        %p307 = scmp.lt.s32.totalorder %s24, 1
        %s308 = scalar_select %p307, %s24, 1
        %p309 = scmp.lt.s32.totalorder %s306, 1
        %s310 = scalar_select %p309, %s306, 1
        %s311 = smul.addr %s308, 2
        %s312 = sadd.s32 %s310, %s311
        %s313 = smul.addr %s312, 4
        %s314 = scalar_lea.vmem %s1, %s313
        %s315 = smul.u32 2, %s25
        %v316 = vld [vmem:[%s304] sm:$0x77]
        %v317 = vld [vmem:[%s314] sm:$0x77]
        %319 = vst [vmem:[#allocation1] ss:$2 sm:$0xff] %v316
        %v320 = vld.sshfl [vmem:[#allocation1] sm:$0xff pattern:$0x75316420]
        %v321 = vld.sshfl [vmem:[#allocation1 + $0x8] sm:$0xff pattern:$0x75316420]
        %325 = vst [vmem:[#allocation1] ss:$2 sm:$0xff] %v317
        %v326 = vld.sshfl [vmem:[#allocation1] sm:$0xff pattern:$0x75316420]
        %v327 = vld.sshfl [vmem:[#allocation1 + $0x8] sm:$0xff pattern:$0x75316420]
        %v328 = vrot.slane %v326, 5
        %v329 = vrot.slane %v327, 5
        %vm332 = vcmask 1042432
        %v333 = vsel %vm332, %v320, %v328
        %v334 = vsel %vm332, %v321, %v329
        %vm335 = vcmp.gt.f32.partialorder %v333, 0.04045
        %vm336 = vcmp.gt.f32.partialorder %v334, 0.04045
        %v337 = vadd.f32 %v333, 0.055
        %v338 = vadd.f32 %v334, 0.055
        %v339 = vrcp.pop 1.055
        %v340 = vmul.f32 1.055, %v339
        %v341 = vsub.f32 1.0, %v340
        %v342 = vmul.f32 %v339, %v341
        %v343 = vadd.f32 %v339, %v342
        %vm344 = vweird.f32 %v339
        %v345 = vsel %vm344, %v339, %v343
        %v346 = vmul.f32 %v337, %v345
        %v347 = vmul.f32 %v338, %v345
        %v348 = vmax.f32 %v346, 1e-12
        %v349 = vmax.f32 %v347, 1e-12
        %v350 = vlog2.pop %v348
        %v351 = vmul.f32 %v350, 0.6931472
        %v352 = vlog2.pop %v349
        %v353 = vmul.f32 %v352, 0.6931472
        %v354 = vmul.f32 %v351, 2.4
        %v355 = vmul.f32 %v353, 2.4
        %v356 = vmul.f32 %v354, 1.442695
        %v357 = vpow.pop %v356
        %v358 = vmul.f32 %v355, 1.442695
        %v359 = vpow.pop %v358
        %v360 = vmul.f32 %v333, 0.07739938
        %v361 = vmul.f32 %v334, 0.07739938
        %v362 = vsel %vm335, %v357, %v360
        %v363 = vsel %vm336, %v359, %v361
        %v364 = vld [vmem:[%s2] sm:$0x3f]
        %vm365 = vcmask 48128
        %v367 = vsel %vm365, %v364, 0
        %vm369 = vcmask 1045504
        %v371 = vsel %vm369, %v362, 0
        %v374 = vsel %vm369, %v363, 0
        %376 = vmatpush.msra.mxu0 0.0
        %377 = vmatpush.msra.mxu0 0.0
        %378 = vmatpush.msra.mxu0 0.0
        %379 = vmatpush.msra.mxu0 0.0
        %380 = vmatpush.msra.mxu0 0.0
        %381 = vmatpush.msra.mxu0 0.0
        %382 = vmatpush.msra.mxu0 0.0
        %383 = vmatpush.msra.mxu0 0.0
        %384 = vmatpush.msra.mxu0 0.0
        %385 = vmatpush.msra.mxu0 0.0
        %386 = vmatpush.msra.mxu0 0.0
        %387 = vmatpush.msra.mxu0 0.0
        %388 = vmatpush.msra.mxu0 0.0
        %389 = vmatpush.msra.mxu0 0.0
        %390 = vmatpush.msra.mxu0 0.0
        %391 = vmatpush.msra.mxu0 %v371
        %392 = vmatmul.f32.gmra.mxu0 %v367
        %v393 = vpop.f32.mrf.mxu0
        %v394 = vadd.f32 0.0, %v393
        %395 = vdwg.mxu0
        %396 = vmatpush.msra.mxu0 0.0
        %397 = vmatpush.msra.mxu0 0.0
        %398 = vmatpush.msra.mxu0 0.0
        %399 = vmatpush.msra.mxu0 0.0
        %400 = vmatpush.msra.mxu0 0.0
        %401 = vmatpush.msra.mxu0 0.0
        %402 = vmatpush.msra.mxu0 0.0
        %403 = vmatpush.msra.mxu0 0.0
        %404 = vmatpush.msra.mxu0 0.0
        %405 = vmatpush.msra.mxu0 0.0
        %406 = vmatpush.msra.mxu0 0.0
        %407 = vmatpush.msra.mxu0 0.0
        %408 = vmatpush.msra.mxu0 0.0
        %409 = vmatpush.msra.mxu0 0.0
        %410 = vmatpush.msra.mxu0 0.0
        %411 = vmatpush.msra.mxu0 %v374
        %412 = vmatmul.f32.gmra.mxu0 %v367
        %v413 = vpop.f32.mrf.mxu0
        %v414 = vadd.f32 0.0, %v413
        %415 = vdwg.mxu0
        %vm416 = vcmp.gt.f32.partialorder %v394, 0.008856
        %vm417 = vcmp.gt.f32.partialorder %v414, 0.008856
        %v418 = vmax.f32 %v394, 1e-12
        %v419 = vmax.f32 %v414, 1e-12
        %v420 = vlog2.pop %v418
        %v421 = vmul.f32 %v420, 0.6931472
        %v422 = vlog2.pop %v419
        %v423 = vmul.f32 %v422, 0.6931472
        %v424 = vmul.f32 %v421, 0.33333334
        %v425 = vmul.f32 %v423, 0.33333334
        %v426 = vmul.f32 %v424, 1.442695
        %v427 = vpow.pop %v426
        %v428 = vmul.f32 %v425, 1.442695
        %v429 = vpow.pop %v428
        %v430 = vmul.f32 %v394, 7.787
        %v431 = vmul.f32 %v414, 7.787
        %v432 = vadd.f32 %v430, 0.13793103
        %v433 = vadd.f32 %v431, 0.13793103
        %v434 = vsel %vm416, %v427, %v432
        %v435 = vsel %vm417, %v429, %v433
        %v436 = vld [vmem:[%s3] sm:$0x7f]
        %v437 = vld [vmem:[%s4] sm:$0x7f]
        %439 = vset.pattern.permute.xlu0 0
        %440 = vperm.xlu0 %439, %v437
        %v441 = vpop.permute.xlu0 %440
        %v444 = vsel %vm365, %v436, 0
        %v447 = vsel %vm369, %v434, 0
        %v450 = vsel %vm369, %v435, 0
        %452 = vmatpush.msra.mxu0 0.0
        %453 = vmatpush.msra.mxu0 0.0
        %454 = vmatpush.msra.mxu0 0.0
        %455 = vmatpush.msra.mxu0 0.0
        %456 = vmatpush.msra.mxu0 0.0
        %457 = vmatpush.msra.mxu0 0.0
        %458 = vmatpush.msra.mxu0 0.0
        %459 = vmatpush.msra.mxu0 0.0
        %460 = vmatpush.msra.mxu0 0.0
        %461 = vmatpush.msra.mxu0 0.0
        %462 = vmatpush.msra.mxu0 0.0
        %463 = vmatpush.msra.mxu0 0.0
        %464 = vmatpush.msra.mxu0 0.0
        %465 = vmatpush.msra.mxu0 0.0
        %466 = vmatpush.msra.mxu0 0.0
        %467 = vmatpush.msra.mxu0 %v447
        %468 = vmatmul.f32.gmra.mxu0 %v444
        %v469 = vpop.f32.mrf.mxu0
        %v470 = vadd.f32 %v441, %v469
        %471 = vdwg.mxu0
        %472 = vmatpush.msra.mxu0 0.0
        %473 = vmatpush.msra.mxu0 0.0
        %474 = vmatpush.msra.mxu0 0.0
        %475 = vmatpush.msra.mxu0 0.0
        %476 = vmatpush.msra.mxu0 0.0
        %477 = vmatpush.msra.mxu0 0.0
        %478 = vmatpush.msra.mxu0 0.0
        %479 = vmatpush.msra.mxu0 0.0
        %480 = vmatpush.msra.mxu0 0.0
        %481 = vmatpush.msra.mxu0 0.0
        %482 = vmatpush.msra.mxu0 0.0
        %483 = vmatpush.msra.mxu0 0.0
        %484 = vmatpush.msra.mxu0 0.0
        %485 = vmatpush.msra.mxu0 0.0
        %486 = vmatpush.msra.mxu0 0.0
        %487 = vmatpush.msra.mxu0 %v450
        %488 = vmatmul.f32.gmra.mxu0 %v444
        %v489 = vpop.f32.mrf.mxu0
        %v490 = vadd.f32 %v441, %v489
        %491 = vdwg.mxu0
        %v492 = vmax.f32 %v470, -80.0
        %v493 = vmax.f32 %v490, -80.0
        %v494 = vmin.f32 %v492, 80.0
        %v495 = vmin.f32 %v493, 80.0
        %v498 = vrot.slane %v494, 3
        %v499 = vrot.slane %v495, 3
        %v502 = vsub.f32 %v494, %v498
        %v503 = vsub.f32 %v495, %v499
        %v504 = vand.u32 2147483647, %v502
        %v505 = vand.u32 2147483647, %v503
        %v506 = vld [vmem:[%s5] sm:$0xff]
        %v507 = vld [vmem:[%s5 + $0x8] sm:$0xff]
        %v508 = vld [vmem:[%s5 + $0x10] sm:$0xff]
        %v509 = vld [vmem:[%s5 + $0x18] sm:$0xff]
        %v510 = vld [vmem:[%s5 + $0x20] sm:$0xff]
        %v511 = vld [vmem:[%s5 + $0x28] sm:$0xff]
        %v512 = vld [vmem:[%s5 + $0x30] sm:$0xff]
        %v513 = vld [vmem:[%s5 + $0x38] sm:$0xff]
        %v514 = vld [vmem:[%s5 + $0x40] sm:$0xff]
        %v515 = vld [vmem:[%s5 + $0x48] sm:$0xff]
        %v516 = vld [vmem:[%s5 + $0x50] sm:$0xff]
        %v517 = vld [vmem:[%s5 + $0x58] sm:$0xff]
        %v518 = vld [vmem:[%s5 + $0x60] sm:$0xff]
        %v519 = vld [vmem:[%s5 + $0x68] sm:$0xff]
        %vm520 = vcmask 56320
        %v522 = vsel %vm520, %v506, 0
        %v525 = vsel %vm520, %v507, 0
        %v528 = vsel %vm520, %v508, 0
        %v531 = vsel %vm520, %v509, 0
        %v534 = vsel %vm520, %v510, 0
        %v537 = vsel %vm520, %v511, 0
        %v540 = vsel %vm520, %v512, 0
        %v543 = vsel %vm520, %v513, 0
        %v546 = vsel %vm520, %v514, 0
        %v549 = vsel %vm520, %v515, 0
        %v552 = vsel %vm520, %v516, 0
        %v555 = vsel %vm520, %v517, 0
        %v558 = vsel %vm520, %v518, 0
        %v561 = vsel %vm520, %v519, 0
        %vm563 = vcmask 1046528
        %v564 = vsel %vm563, %v494, 0
        %v566 = vsel %vm563, %v495, 0
        %568 = vmatpush.msra.mxu0 0.0
        %569 = vmatpush.msra.mxu0 0.0
        %570 = vmatpush.msra.mxu0 0.0
        %571 = vmatpush.msra.mxu0 0.0
        %572 = vmatpush.msra.mxu0 0.0
        %573 = vmatpush.msra.mxu0 0.0
        %574 = vmatpush.msra.mxu0 0.0
        %575 = vmatpush.msra.mxu0 0.0
        %576 = vmatpush.msra.mxu0 0.0
        %577 = vmatpush.msra.mxu0 0.0
        %578 = vmatpush.msra.mxu0 0.0
        %579 = vmatpush.msra.mxu0 0.0
        %580 = vmatpush.msra.mxu0 0.0
        %581 = vmatpush.msra.mxu0 0.0
        %582 = vmatpush.msra.mxu0 0.0
        %583 = vmatpush.msra.mxu0 %v564
        %584 = vmatmul.f32.gmra.mxu0 %v522
        %v585 = vpop.f32.mrf.mxu0
        %v586 = vadd.f32 0.0, %v585
        %587 = vmatmul.f32.gmra.mxu0 %v525
        %v588 = vpop.f32.mrf.mxu0
        %v589 = vadd.f32 0.0, %v588
        %590 = vmatmul.f32.gmra.mxu0 %v528
        %v591 = vpop.f32.mrf.mxu0
        %v592 = vadd.f32 0.0, %v591
        %593 = vmatmul.f32.gmra.mxu0 %v531
        %v594 = vpop.f32.mrf.mxu0
        %v595 = vadd.f32 0.0, %v594
        %596 = vmatmul.f32.gmra.mxu0 %v534
        %v597 = vpop.f32.mrf.mxu0
        %v598 = vadd.f32 0.0, %v597
        %599 = vmatmul.f32.gmra.mxu0 %v537
        %v600 = vpop.f32.mrf.mxu0
        %v601 = vadd.f32 0.0, %v600
        %602 = vmatmul.f32.gmra.mxu0 %v540
        %v603 = vpop.f32.mrf.mxu0
        %v604 = vadd.f32 0.0, %v603
        %605 = vmatmul.f32.gmra.mxu0 %v543
        %v606 = vpop.f32.mrf.mxu0
        %v607 = vadd.f32 0.0, %v606
        %608 = vmatmul.f32.gmra.mxu0 %v546
        %v609 = vpop.f32.mrf.mxu0
        %v610 = vadd.f32 0.0, %v609
        %611 = vmatmul.f32.gmra.mxu0 %v549
        %v612 = vpop.f32.mrf.mxu0
        %v613 = vadd.f32 0.0, %v612
        %614 = vmatmul.f32.gmra.mxu0 %v552
        %v615 = vpop.f32.mrf.mxu0
        %v616 = vadd.f32 0.0, %v615
        %617 = vmatmul.f32.gmra.mxu0 %v555
        %v618 = vpop.f32.mrf.mxu0
        %v619 = vadd.f32 0.0, %v618
        %620 = vmatmul.f32.gmra.mxu0 %v558
        %v621 = vpop.f32.mrf.mxu0
        %v622 = vadd.f32 0.0, %v621
        %623 = vmatmul.f32.gmra.mxu0 %v561
        %v624 = vpop.f32.mrf.mxu0
        %v625 = vadd.f32 0.0, %v624
        %626 = vdwg.mxu0
        %627 = vmatpush.msra.mxu0 0.0
        %628 = vmatpush.msra.mxu0 0.0
        %629 = vmatpush.msra.mxu0 0.0
        %630 = vmatpush.msra.mxu0 0.0
        %631 = vmatpush.msra.mxu0 0.0
        %632 = vmatpush.msra.mxu0 0.0
        %633 = vmatpush.msra.mxu0 0.0
        %634 = vmatpush.msra.mxu0 0.0
        %635 = vmatpush.msra.mxu0 0.0
        %636 = vmatpush.msra.mxu0 0.0
        %637 = vmatpush.msra.mxu0 0.0
        %638 = vmatpush.msra.mxu0 0.0
        %639 = vmatpush.msra.mxu0 0.0
        %640 = vmatpush.msra.mxu0 0.0
        %641 = vmatpush.msra.mxu0 0.0
        %642 = vmatpush.msra.mxu0 %v566
        %643 = vmatmul.f32.gmra.mxu0 %v522
        %v644 = vpop.f32.mrf.mxu0
        %v645 = vadd.f32 0.0, %v644
        %646 = vmatmul.f32.gmra.mxu0 %v525
        %v647 = vpop.f32.mrf.mxu0
        %v648 = vadd.f32 0.0, %v647
        %649 = vmatmul.f32.gmra.mxu0 %v528
        %v650 = vpop.f32.mrf.mxu0
        %v651 = vadd.f32 0.0, %v650
        %652 = vmatmul.f32.gmra.mxu0 %v531
        %v653 = vpop.f32.mrf.mxu0
        %v654 = vadd.f32 0.0, %v653
        %655 = vmatmul.f32.gmra.mxu0 %v534
        %v656 = vpop.f32.mrf.mxu0
        %v657 = vadd.f32 0.0, %v656
        %658 = vmatmul.f32.gmra.mxu0 %v537
        %v659 = vpop.f32.mrf.mxu0
        %v660 = vadd.f32 0.0, %v659
        %661 = vmatmul.f32.gmra.mxu0 %v540
        %v662 = vpop.f32.mrf.mxu0
        %v663 = vadd.f32 0.0, %v662
        %664 = vmatmul.f32.gmra.mxu0 %v543
        %v665 = vpop.f32.mrf.mxu0
        %v666 = vadd.f32 0.0, %v665
        %667 = vmatmul.f32.gmra.mxu0 %v546
        %v668 = vpop.f32.mrf.mxu0
        %v669 = vadd.f32 0.0, %v668
        %670 = vmatmul.f32.gmra.mxu0 %v549
        %v671 = vpop.f32.mrf.mxu0
        %v672 = vadd.f32 0.0, %v671
        %673 = vmatmul.f32.gmra.mxu0 %v552
        %v674 = vpop.f32.mrf.mxu0
        %v675 = vadd.f32 0.0, %v674
        %676 = vmatmul.f32.gmra.mxu0 %v555
        %v677 = vpop.f32.mrf.mxu0
        %v678 = vadd.f32 0.0, %v677
        %679 = vmatmul.f32.gmra.mxu0 %v558
        %v680 = vpop.f32.mrf.mxu0
        %v681 = vadd.f32 0.0, %v680
        %682 = vmatmul.f32.gmra.mxu0 %v561
        %v683 = vpop.f32.mrf.mxu0
        %v684 = vadd.f32 0.0, %v683
        %685 = vdwg.mxu0
        %v686 = vmax.f32 %v586, %v592
        %v687 = vmax.f32 %v589, %v595
        %v688 = vmax.f32 %v686, %v598
        %v689 = vmax.f32 %v687, %v601
        %v690 = vmax.f32 %v688, %v604
        %v691 = vmax.f32 %v690, %v689
        %v692 = vrot.slane %v691, 4
        %v693 = vmax.f32 %v691, %v692
        %v694 = vrot.slane %v693, 2
        %v695 = vmax.f32 %v693, %v694
        %v696 = vrot.slane %v695, 1
        %v697 = vmax.f32 %v695, %v696
        %v698 = vmax.f32 %v645, %v651
        %v699 = vmax.f32 %v648, %v654
        %v700 = vmax.f32 %v698, %v657
        %v701 = vmax.f32 %v699, %v660
        %v702 = vmax.f32 %v700, %v663
        %v703 = vmax.f32 %v702, %v701
        %v704 = vrot.slane %v703, 4
        %v705 = vmax.f32 %v703, %v704
        %v706 = vrot.slane %v705, 2
        %v707 = vmax.f32 %v705, %v706
        %v708 = vrot.slane %v707, 1
        %v709 = vmax.f32 %v707, %v708
        %v710 = vsub.f32 %v586, %v697
        %v711 = vsub.f32 %v645, %v709
        %v712 = vsub.f32 %v589, %v697
        %v713 = vsub.f32 %v648, %v709
        %v714 = vsub.f32 %v592, %v697
        %v715 = vsub.f32 %v651, %v709
        %v716 = vsub.f32 %v595, %v697
        %v717 = vsub.f32 %v654, %v709
        %v718 = vsub.f32 %v598, %v697
        %v719 = vsub.f32 %v657, %v709
        %v720 = vsub.f32 %v601, %v697
        %v721 = vsub.f32 %v660, %v709
        %v722 = vsub.f32 %v604, %v697
        %v723 = vsub.f32 %v663, %v709
        %v724 = vmul.f32 %v710, 1.442695
        %v725 = vpow.pop %v724
        %v726 = vmul.f32 %v711, 1.442695
        %v727 = vpow.pop %v726
        %v728 = vmul.f32 %v712, 1.442695
        %v729 = vpow.pop %v728
        %v730 = vmul.f32 %v713, 1.442695
        %v731 = vpow.pop %v730
        %v732 = vmul.f32 %v714, 1.442695
        %v733 = vpow.pop %v732
        %v734 = vmul.f32 %v715, 1.442695
        %v735 = vpow.pop %v734
        %v736 = vmul.f32 %v716, 1.442695
        %v737 = vpow.pop %v736
        %v738 = vmul.f32 %v717, 1.442695
        %v739 = vpow.pop %v738
        %v740 = vmul.f32 %v718, 1.442695
        %v741 = vpow.pop %v740
        %v742 = vmul.f32 %v719, 1.442695
        %v743 = vpow.pop %v742
        %v744 = vmul.f32 %v720, 1.442695
        %v745 = vpow.pop %v744
        %v746 = vmul.f32 %v721, 1.442695
        %v747 = vpow.pop %v746
        %v748 = vmul.f32 %v722, 1.442695
        %v749 = vpow.pop %v748
        %v750 = vmul.f32 %v723, 1.442695
        %v751 = vpow.pop %v750
        %v752 = vadd.f32 %v725, %v729
        %v753 = vadd.f32 %v752, %v733
        %v754 = vadd.f32 %v753, %v737
        %v755 = vadd.f32 %v754, %v741
        %v756 = vadd.f32 %v755, %v745
        %v757 = vadd.f32 %v756, %v749
        %v758 = vrot.slane %v757, 4
        %v759 = vadd.f32 %v757, %v758
        %v760 = vrot.slane %v759, 2
        %v761 = vadd.f32 %v759, %v760
        %v762 = vrot.slane %v761, 1
        %v763 = vadd.f32 %v761, %v762
        %v764 = vadd.f32 %v727, %v731
        %v765 = vadd.f32 %v764, %v735
        %v766 = vadd.f32 %v765, %v739
        %v767 = vadd.f32 %v766, %v743
        %v768 = vadd.f32 %v767, %v747
        %v769 = vadd.f32 %v768, %v751
        %v770 = vrot.slane %v769, 4
        %v771 = vadd.f32 %v769, %v770
        %v772 = vrot.slane %v771, 2
        %v773 = vadd.f32 %v771, %v772
        %v774 = vrot.slane %v773, 1
        %v775 = vadd.f32 %v773, %v774
        %v776 = vlog2.pop %v763
        %v777 = vmul.f32 %v776, 0.6931472
        %v778 = vlog2.pop %v775
        %v779 = vmul.f32 %v778, 0.6931472
        %v780 = vadd.f32 %v697, %v777
        %v781 = vadd.f32 %v709, %v779
        %v782 = vsub.f32 %v586, %v780
        %v783 = vsub.f32 %v645, %v781
        %v784 = vsub.f32 %v589, %v780
        %v785 = vsub.f32 %v648, %v781
        %v786 = vsub.f32 %v592, %v780
        %v787 = vsub.f32 %v651, %v781
        %v788 = vsub.f32 %v595, %v780
        %v789 = vsub.f32 %v654, %v781
        %v790 = vsub.f32 %v598, %v780
        %v791 = vsub.f32 %v657, %v781
        %v792 = vsub.f32 %v601, %v780
        %v793 = vsub.f32 %v660, %v781
        %v794 = vsub.f32 %v604, %v780
        %v795 = vsub.f32 %v663, %v781
        %v796 = vmax.f32 %v782, -6.9077554
        %v797 = vmax.f32 %v783, -6.9077554
        %v798 = vmax.f32 %v784, -6.9077554
        %v799 = vmax.f32 %v785, -6.9077554
        %v800 = vmax.f32 %v786, -6.9077554
        %v801 = vmax.f32 %v787, -6.9077554
        %v802 = vmax.f32 %v788, -6.9077554
        %v803 = vmax.f32 %v789, -6.9077554
        %v804 = vmax.f32 %v790, -6.9077554
        %v805 = vmax.f32 %v791, -6.9077554
        %v806 = vmax.f32 %v792, -6.9077554
        %v807 = vmax.f32 %v793, -6.9077554
        %v808 = vmax.f32 %v794, -6.9077554
        %v809 = vmax.f32 %v795, -6.9077554
        %v810 = vmin.f32 %v796, -0.0010005003
        %v811 = vmin.f32 %v797, -0.0010005003
        %v812 = vmin.f32 %v798, -0.0010005003
        %v813 = vmin.f32 %v799, -0.0010005003
        %v814 = vmin.f32 %v800, -0.0010005003
        %v815 = vmin.f32 %v801, -0.0010005003
        %v816 = vmin.f32 %v802, -0.0010005003
        %v817 = vmin.f32 %v803, -0.0010005003
        %v818 = vmin.f32 %v804, -0.0010005003
        %v819 = vmin.f32 %v805, -0.0010005003
        %v820 = vmin.f32 %v806, -0.0010005003
        %v821 = vmin.f32 %v807, -0.0010005003
        %v822 = vmin.f32 %v808, -0.0010005003
        %v823 = vmin.f32 %v809, -0.0010005003
        %v824 = vmax.f32 %v607, %v613
        %v825 = vmax.f32 %v610, %v616
        %v826 = vmax.f32 %v824, %v619
        %v827 = vmax.f32 %v825, %v622
        %v828 = vmax.f32 %v826, %v625
        %v829 = vmax.f32 %v828, %v827
        %v830 = vrot.slane %v829, 4
        %v831 = vmax.f32 %v829, %v830
        %v832 = vrot.slane %v831, 2
        %v833 = vmax.f32 %v831, %v832
        %v834 = vrot.slane %v833, 1
        %v835 = vmax.f32 %v833, %v834
        %v836 = vmax.f32 %v666, %v672
        %v837 = vmax.f32 %v669, %v675
        %v838 = vmax.f32 %v836, %v678
        %v839 = vmax.f32 %v837, %v681
        %v840 = vmax.f32 %v838, %v684
        %v841 = vmax.f32 %v840, %v839
        %v842 = vrot.slane %v841, 4
        %v843 = vmax.f32 %v841, %v842
        %v844 = vrot.slane %v843, 2
        %v845 = vmax.f32 %v843, %v844
        %v846 = vrot.slane %v845, 1
        %v847 = vmax.f32 %v845, %v846
        %v848 = vsub.f32 %v607, %v835
        %v849 = vsub.f32 %v666, %v847
        %v850 = vsub.f32 %v610, %v835
        %v851 = vsub.f32 %v669, %v847
        %v852 = vsub.f32 %v613, %v835
        %v853 = vsub.f32 %v672, %v847
        %v854 = vsub.f32 %v616, %v835
        %v855 = vsub.f32 %v675, %v847
        %v856 = vsub.f32 %v619, %v835
        %v857 = vsub.f32 %v678, %v847
        %v858 = vsub.f32 %v622, %v835
        %v859 = vsub.f32 %v681, %v847
        %v860 = vsub.f32 %v625, %v835
        %v861 = vsub.f32 %v684, %v847
        %v862 = vmul.f32 %v848, 1.442695
        %v863 = vpow.pop %v862
        %v864 = vmul.f32 %v849, 1.442695
        %v865 = vpow.pop %v864
        %v866 = vmul.f32 %v850, 1.442695
        %v867 = vpow.pop %v866
        %v868 = vmul.f32 %v851, 1.442695
        %v869 = vpow.pop %v868
        %v870 = vmul.f32 %v852, 1.442695
        %v871 = vpow.pop %v870
        %v872 = vmul.f32 %v853, 1.442695
        %v873 = vpow.pop %v872
        %v874 = vmul.f32 %v854, 1.442695
        %v875 = vpow.pop %v874
        %v876 = vmul.f32 %v855, 1.442695
        %v877 = vpow.pop %v876
        %v878 = vmul.f32 %v856, 1.442695
        %v879 = vpow.pop %v878
        %v880 = vmul.f32 %v857, 1.442695
        %v881 = vpow.pop %v880
        %v882 = vmul.f32 %v858, 1.442695
        %v883 = vpow.pop %v882
        %v884 = vmul.f32 %v859, 1.442695
        %v885 = vpow.pop %v884
        %v886 = vmul.f32 %v860, 1.442695
        %v887 = vpow.pop %v886
        %v888 = vmul.f32 %v861, 1.442695
        %v889 = vpow.pop %v888
        %v890 = vadd.f32 %v863, %v867
        %v891 = vadd.f32 %v890, %v871
        %v892 = vadd.f32 %v891, %v875
        %v893 = vadd.f32 %v892, %v879
        %v894 = vadd.f32 %v893, %v883
        %v895 = vadd.f32 %v894, %v887
        %v896 = vrot.slane %v895, 4
        %v897 = vadd.f32 %v895, %v896
        %v898 = vrot.slane %v897, 2
        %v899 = vadd.f32 %v897, %v898
        %v900 = vrot.slane %v899, 1
        %v901 = vadd.f32 %v899, %v900
        %v902 = vadd.f32 %v865, %v869
        %v903 = vadd.f32 %v902, %v873
        %v904 = vadd.f32 %v903, %v877
        %v905 = vadd.f32 %v904, %v881
        %v906 = vadd.f32 %v905, %v885
        %v907 = vadd.f32 %v906, %v889
        %v908 = vrot.slane %v907, 4
        %v909 = vadd.f32 %v907, %v908
        %v910 = vrot.slane %v909, 2
        %v911 = vadd.f32 %v909, %v910
        %v912 = vrot.slane %v911, 1
        %v913 = vadd.f32 %v911, %v912
        %v914 = vrcp.pop %v901
        %v915 = vrcp.pop %v913
        %v916 = vmul.f32 %v863, %v810
        %v917 = vmul.f32 %v865, %v811
        %v918 = vmul.f32 %v867, %v812
        %v919 = vmul.f32 %v869, %v813
        %v920 = vmul.f32 %v871, %v814
        %v921 = vmul.f32 %v873, %v815
        %v922 = vmul.f32 %v875, %v816
        %v923 = vmul.f32 %v877, %v817
        %v924 = vmul.f32 %v879, %v818
        %v925 = vmul.f32 %v881, %v819
        %v926 = vmul.f32 %v883, %v820
        %v927 = vmul.f32 %v885, %v821
        %v928 = vmul.f32 %v887, %v822
        %v929 = vmul.f32 %v889, %v823
        %v930 = vadd.f32 %v916, %v918
        %v931 = vadd.f32 %v930, %v920
        %v932 = vadd.f32 %v931, %v922
        %v933 = vadd.f32 %v932, %v924
        %v934 = vadd.f32 %v933, %v926
        %v935 = vadd.f32 %v934, %v928
        %v936 = vrot.slane %v935, 4
        %v937 = vadd.f32 %v935, %v936
        %v938 = vrot.slane %v937, 2
        %v939 = vadd.f32 %v937, %v938
        %v940 = vrot.slane %v939, 1
        %v941 = vadd.f32 %v939, %v940
        %v942 = vadd.f32 %v917, %v919
        %v943 = vadd.f32 %v942, %v921
        %v944 = vadd.f32 %v943, %v923
        %v945 = vadd.f32 %v944, %v925
        %v946 = vadd.f32 %v945, %v927
        %v947 = vadd.f32 %v946, %v929
        %v948 = vrot.slane %v947, 4
        %v949 = vadd.f32 %v947, %v948
        %v950 = vrot.slane %v949, 2
        %v951 = vadd.f32 %v949, %v950
        %v952 = vrot.slane %v951, 1
        %v953 = vadd.f32 %v951, %v952
        %v954 = vsub.f32 0.0, %v941
        %v955 = vsub.f32 0.0, %v953
        %v956 = vmul.f32 %v954, %v914
        %v957 = vmul.f32 %v955, %v915
        %vm958 = vcmask 1040384
        %v959 = vsel %vm958, %v504, 0.0
        %v960 = vsel %vm958, %v505, 0.0
        %v961 = vadd.f32 %v959, %v960
        %962 = vadd.xlane.f32.xlu0 %v961
        %v963 = vpop.xlane.xlu0 %962
        %v964 = vrot.slane %v963, 4
        %v965 = vadd.f32 %v963, %v964
        %v966 = vrot.slane %v965, 2
        %v967 = vadd.f32 %v965, %v966
        %v968 = vrot.slane %v967, 1
        %v969 = vadd.f32 %v967, %v968
        %s970 = vtos %v969
        %v971 = vsel %vm958, %v956, 0.0
        %v972 = vsel %vm958, %v957, 0.0
        %v973 = vadd.f32 %v971, %v972
        %974 = vadd.xlane.f32.xlu0 %v973
        %v975 = vpop.xlane.xlu0 %974
        %v976 = vrot.slane %v975, 4
        %v977 = vadd.f32 %v975, %v976
        %v978 = vrot.slane %v977, 2
        %v979 = vadd.f32 %v977, %v978
        %v980 = vrot.slane %v979, 1
        %v981 = vadd.f32 %v979, %v980
        %s982 = vtos %v981
        %v983 = vlaneseq
        %v984 = vand.u32 %v983, 127
        %vm985 = vcmp.eq.s32.totalorder %v984, 0
        %vm986 = vcmp.eq.s32.totalorder %v984, 1
        %v987 = vstv %s982
        %v988 = vsel %vm986, %v987, 0.0
        %v989 = vstv %s970
        %v990 = vsel %vm985, %v989, %v988
        %991 = vst [vmem:[%s295] sm:$0xff] %v990
        %s992 = sand.u32 %s182, 1
        %s993 = scalar_lea.sflag [#allocation3], %s992
        %s994 = sand.u32 %s182, 1
        %s995 = smul.addr %s994, 8
        %s996 = scalar_lea.vmem [#allocation2], %s995
        // Predicated region
        $region45: #{tpu_custom_call.1} parent=43 // pred_check
          %p997 = pneg %p192
        $region46: #{tpu_custom_call.1} parent=43 // pred_check_branch
          %999 = sbr.rel (%p997) target = $region48
        $region47: #{tpu_custom_call.1} parent=43 // pred_region
          %1001 = vsyncadd %s993, 0
          %s1002 = sadd.s32 %s25, %s24
          %s1003 = smul.addr %s1002, 8
          %s1004 = scalar_lea.hbm %s6, %s1003
          %s1006 = sshll.u32 %s996, 4
          %s1007 = int_to_ptr.vmem [resolvable:$true] %s1006
          %s1008 = sshll.u32 %s1004, 4
          %s1009 = int_to_ptr.hbm [resolvable:$true] %s1008
          %1011 = dma.vmem_to_hbm [thread:$0]  %s1007, 128, %s1009, %s993
        $region48: #{tpu_custom_call.1} parent=43 // pred_fallthru
          _
      $region44: #{tpu_custom_call.1} parent=5 // pred_fallthru
        _
      %p1012 = scmp.le.s32.totalorder 2, %s15
      // Predicated region
      $region49: #{tpu_custom_call.1} parent=5 // pred_check
        %p1013 = pneg %p1012
      $region50: #{tpu_custom_call.1} parent=5 // pred_check_branch
        %1015 = sbr.rel (%p1013) target = $region52
      $region51: #{tpu_custom_call.1} parent=5 // pred_region
        %s1016 = ssub.s32 %s15, 2
        // Predicated region
        $region53: #{tpu_custom_call.1} parent=51 // pred_check
          %p1017 = pneg %p198
        $region54: #{tpu_custom_call.1} parent=51 // pred_check_branch
          %1019 = sbr.rel (%p1017) target = $region56
        $region55: #{tpu_custom_call.1} parent=51 // pred_region
          %s1020 = sand.u32 %s183, 1
          %s1021 = scalar_lea.sflag [#allocation3], %s1020
          %s1022 = sand.u32 %s183, 1
          %s1023 = smul.addr %s1022, 8
          %s1024 = scalar_lea.vmem [#allocation2], %s1023
          %1026 = dma.done %s1021, 128
        $region56: #{tpu_custom_call.1} parent=51 // pred_fallthru
          _
      $region52: #{tpu_custom_call.1} parent=5 // pred_fallthru
        _
    $region6: #{tpu_custom_call.1} parent=1 // loop_footer
      %s19 = sadd.s32 1, %s15
    $region7: #{tpu_custom_call.1} parent=1 // loop_footer_branch
      %14 = sbr.rel target = $region3
    $region8: #{tpu_custom_call.1} parent=1 // loop_exit
      _
    %1027 = vsyncpa [#allocation3], 1
    %s1028 = scalar_lea.sflag [#allocation3], 1
    %1029 = vsyncpa %s1028, 1

</llo_original>
